<compile_context>
chip_gen: v7x
topology: tpu7x:2x2x1
jax: 0.10.0
libtpu: 0.0.40
codegen_flags: <defaults>
</compile_context>

<pallas_src>
import numpy as np
import jax
import jax.numpy as jnp
from jax import lax
from jax.experimental import pallas as pl
from jax.experimental.pallas import tpu as pltpu

NUM_CLASSES = 16
C_IN, H_IN, W_IN = 3, 64, 64
C_OUT = 6                    # conv1 out channels
C_PAD = 8                    # padded to 8 sublanes
TAPS = C_IN * 9              # 27 conv taps
TAPS_PAD = 32                # 27 taps + 4 zero rows + 1 ones-row (bias)
H_POOL = W_POOL = 16
POOLED = H_POOL * W_POOL     # 256
LANES = 4 * POOLED           # 1024 lanes per image (4 pool slots x 256)
TB_MAX = 64                  # images per grid step; ~15 MiB VMEM -> safe on v5e/v6e/v7x
                             # and keeps grid >= 2 (both v7x TCs busy) for n >= 128.


def _fused_kernel(x_ref, w1_ref, w2_ref, b2_ref, o_ref, conv_ref, pooled_ref):
    """x_ref: (32, tb*1024) bf16 tap-major slab; w1: (8, 32) bf16; w2: (256, 256) bf16;
    b2: (1, 256) f32; o: (tb, 6, 256) f32; conv scratch: (8, tb*1024) f32;
    pooled scratch: (tb*8, 256) f32."""
    tb = o_ref.shape[0]

    # conv1 (3x3, stride 2, pad 1) + bias (ones-row fold) for the WHOLE tile as one
    # MXU matmul: (8, 32) @ (32, tb*1024) -> (8, tb*1024), bf16 x bf16, f32 accumulate.
    conv_ref[...] = jnp.dot(w1_ref[...], x_ref[...],
                            preferred_element_type=jnp.float32)

    # Per image: 2x2 / stride-2 max-pool over the 4 aligned 256-lane pool slots, fused
    # with ReLU (relu commutes with max). Rows (b*8 + channel) land in the pooled scratch.
    def pool_one(b, carry):
        base = b * LANES
        s0 = conv_ref[:, pl.ds(pl.multiple_of(base, POOLED), POOLED)]
        s1 = conv_ref[:, pl.ds(pl.multiple_of(base + POOLED, POOLED), POOLED)]
        s2 = conv_ref[:, pl.ds(pl.multiple_of(base + 2 * POOLED, POOLED), POOLED)]
        s3 = conv_ref[:, pl.ds(pl.multiple_of(base + 3 * POOLED, POOLED), POOLED)]
        pooled = jnp.maximum(jnp.maximum(s0, s1), jnp.maximum(s2, s3))
        pooled = jnp.maximum(pooled, 0.0)                       # ReLU
        pooled_ref[pl.ds(pl.multiple_of(b * C_PAD, C_PAD), C_PAD), :] = pooled
        return carry

    lax.fori_loop(0, tb, pool_one, None, unroll=4 if tb % 4 == 0 else 1)

    # fc2 along the last (width) axis: one block-diagonal (256,256) bf16 matmul,
    # M = tb*8 rows, f32 accumulate, f32 bias add.
    out = jnp.dot(pooled_ref[...].astype(jnp.bfloat16), w2_ref[...],
                  preferred_element_type=jnp.float32) + b2_ref[...]
    o_ref[...] = out.reshape(tb, C_PAD, POOLED)[:, :C_OUT, :]   # drop the 2 pad channels


def pack_params(params):
    """One-time packing of PyTorch-style params into kernel-friendly constants."""
    w1, b1, w2, b2 = params
    # conv weights packed as (8, 32) bf16: [:6,:27] = taps, [:6,31] = bias (ones-row).
    w1m = jnp.zeros((C_PAD, TAPS_PAD), jnp.float32)
    w1m = w1m.at[:C_OUT, :TAPS].set(w1.reshape(C_OUT, TAPS).astype(jnp.float32))
    w1m = w1m.at[:C_OUT, TAPS_PAD - 1].set(b1.astype(jnp.float32))
    # fc2 along the width axis -> block-diagonal (256, 256) weight (bf16) + tiled bias.
    w2big = jnp.kron(jnp.eye(H_POOL, dtype=jnp.float32), w2.T.astype(jnp.float32))
    b2big = jnp.tile(b2.astype(jnp.float32), (H_POOL,)).reshape(1, H_POOL * NUM_CLASSES)
    return (w1m.astype(jnp.bfloat16), w2big.astype(jnp.bfloat16), b2big)


def _build_im2col(xf):
    """(n, 3, 64, 64) f32 -> (32, n*1024) bf16 tap-major im2col slab.

    row  t = c*9 + dy*3 + dx  (+ 4 zero rows + 1 ones-row for the bias fold)
    lane l = b*1024 + k*256 + ii*16 + jj   with k = ky*2 + kx the 2x2 pool slot.
    """
    n = xf.shape[0]
    xpad = jnp.pad(xf.astype(jnp.bfloat16), ((0, 0), (0, 0), (1, 1), (1, 1)))  # (n,3,66,66)
    taps = []
    for dy in range(3):
        for dx in range(3):
            blk = xpad[:, :, dy:dy + 63:2, dx:dx + 63:2]          # (n, 3, 32, 32)
            blk = blk.reshape(n, C_IN, H_POOL, 2, W_POOL, 2)      # (b, c, ii, ky, jj, kx)
            blk = jnp.transpose(blk, (1, 0, 3, 5, 2, 4))          # (c, b, ky, kx, ii, jj)
            taps.append(blk.reshape(C_IN, n * LANES))
    slab = jnp.stack(taps, axis=1).reshape(TAPS, n * LANES)       # t = c*9 + dy*3 + dx
    return jnp.concatenate(
        [slab,
         jnp.zeros((TAPS_PAD - TAPS - 1, n * LANES), jnp.bfloat16),
         jnp.ones((1, n * LANES), jnp.bfloat16)], axis=0)         # (32, n*1024)


def animal_baseline_forward(x, packed_params, tb=TB_MAX):
    w1m, w2big, b2big = packed_params
    xf = jnp.reshape(x, (-1, C_IN, H_IN, W_IN)).astype(jnp.float32)
    n = xf.shape[0]
    tb = max(1, min(tb, n))
    n_pad = pl.cdiv(n, tb) * tb
    if n_pad != n:                                   # pad batch to a multiple of the tile
        xf = jnp.pad(xf, ((0, n_pad - n), (0, 0), (0, 0), (0, 0)))
    xslab = _build_im2col(xf)                        # (32, n_pad*1024) bf16

    grid_spec = pltpu.PrefetchScalarGridSpec(
        num_scalar_prefetch=0,
        grid=(n_pad // tb,),
        in_specs=[
            pl.BlockSpec((TAPS_PAD, tb * LANES), lambda i: (0, i)),
            pl.BlockSpec((C_PAD, TAPS_PAD), lambda i: (0, 0)),
            pl.BlockSpec((POOLED, POOLED), lambda i: (0, 0)),
            pl.BlockSpec((1, POOLED), lambda i: (0, 0)),
        ],
        out_specs=pl.BlockSpec((tb, C_OUT, POOLED), lambda i: (i, 0, 0)),
        scratch_shapes=[
            pltpu.VMEM((C_PAD, tb * LANES), jnp.float32),    # conv1 output (f32)
            pltpu.VMEM((tb * C_PAD, POOLED), jnp.float32),   # pooled activations
        ],
    )
    out = pl.pallas_call(
        _fused_kernel,
        out_shape=jax.ShapeDtypeStruct((n_pad, C_OUT, POOLED), jnp.float32),
        grid_spec=grid_spec,
        compiler_params=pltpu.CompilerParams(
            dimension_semantics=("parallel",),
            vmem_limit_bytes=48 << 20,               # v5e default (16 MiB) is too small
        ),
    )(xslab, w1m, w2big, b2big)

    # drop padded batch rows, unflatten lanes -> (n, 6, 16, 16)
    return out[:n].reshape(n, C_OUT, H_POOL, W_POOL)


if __name__ == "__main__":
    key = jax.random.PRNGKey(0)
    k1, k2, k3, k4, kx = jax.random.split(key, 5)
    w1 = (jax.random.uniform(k1, (C_OUT, C_IN, 3, 3), jnp.float32) - 0.5) * (2.0 / np.sqrt(27.0))
    b1 = (jax.random.uniform(k2, (C_OUT,), jnp.float32) - 0.5) * (2.0 / np.sqrt(27.0))
    w2 = (jax.random.uniform(k3, (NUM_CLASSES, W_POOL), jnp.float32) - 0.5) * 0.5
    b2 = (jax.random.uniform(k4, (NUM_CLASSES,), jnp.float32) - 0.5) * 0.5
    x = jax.random.normal(kx, (2, C_IN, H_IN, W_IN), jnp.float32)

    packed = pack_params((w1, b1, w2, b2))           # packed once -> jit constants
    fwd = jax.jit(lambda xx: animal_baseline_forward(xx, packed))
    out = jax.block_until_ready(fwd(x))
    assert out.shape == (2, C_OUT, H_POOL, W_POOL)

    # numpy reference of the same (adapted) forward pass
    xn = np.asarray(x, np.float32)
    w1n, b1n, w2n, b2n = (np.asarray(a, np.float32) for a in (w1, b1, w2, b2))
    xp = np.pad(xn, ((0, 0), (0, 0), (1, 1), (1, 1)))
    conv = np.zeros((2, C_OUT, 32, 32), np.float32)
    for o in range(C_OUT):
        for c in range(C_IN):
            for dy in range(3):
                for dx in range(3):
                    conv[:, o] += w1n[o, c, dy, dx] * xp[:, c, dy:dy + 63:2, dx:dx + 63:2]
    conv += b1n[None, :, None, None]
    act = np.maximum(conv, 0.0)
    pooled = act.reshape(2, C_OUT, 16, 2, 16, 2).max(axis=(3, 5))
    ref = np.einsum("nchw,ow->ncho", pooled, w2n) + b2n

    np.testing.assert_allclose(np.asarray(out), ref, rtol=5e-2, atol=5e-2)
    print("KERNEL_OK")
</pallas_src>

<mosaic_0001>
module attributes {stable_mosaic.version = 11 : i64} {
  func.func @_fused_kernel(%arg0: i32, %arg1: memref<32x2048xbf16, #tpu.memory_space<vmem>>, %arg2: memref<8x32xbf16, #tpu.memory_space<vmem>>, %arg3: memref<256x256xbf16, #tpu.memory_space<vmem>>, %arg4: memref<1x256xf32, #tpu.memory_space<vmem>>, %arg5: memref<2x6x256xf32, #tpu.memory_space<vmem>>, %arg6: memref<8x2048xf32, #tpu.memory_space<vmem>>, %arg7: memref<16x256xf32, #tpu.memory_space<vmem>>) attributes {dimension_semantics = [#tpu.dimension_semantics<parallel>], iteration_bounds = array<i64: 1>, scalar_prefetch = 0 : i64, scratch_operands = 2 : i64, tpu.core_type = #tpu.core_type<tc>, window_params = [{transform_indices = @transform_0, window_bounds = array<i64: 32, 2048>}, {pipeline_mode = #tpu.pipeline_mode<synchronous>, transform_indices = @transform_1, window_bounds = array<i64: 8, 32>}, {pipeline_mode = #tpu.pipeline_mode<synchronous>, transform_indices = @transform_2, window_bounds = array<i64: 256, 256>}, {pipeline_mode = #tpu.pipeline_mode<synchronous>, transform_indices = @transform_3, window_bounds = array<i64: 1, 256>}, {transform_indices = @transform_4, window_bounds = array<i64: 2, 6, 256>}]} {
    %c0 = arith.constant 0 : index
    %c0_0 = arith.constant 0 : index
    %0 = vector.load %arg2[%c0, %c0_0] : memref<8x32xbf16, #tpu.memory_space<vmem>>, vector<8x32xbf16>
    %c0_1 = arith.constant 0 : index
    %c0_2 = arith.constant 0 : index
    %1 = vector.load %arg1[%c0_1, %c0_2] : memref<32x2048xbf16, #tpu.memory_space<vmem>>, vector<32x2048xbf16>
    %cst = arith.constant dense<0.000000e+00> : vector<8x2048xf32>
    %2 = tpu.matmul %0, %1, %cst {dimension_numbers = #tpu.dot_dimension_numbers<[1], [0], [0], [1], [0, 0, 1, 1], [], []>} : vector<8x32xbf16>, vector<32x2048xbf16>, vector<8x2048xf32> -> vector<8x2048xf32>
    %c0_3 = arith.constant 0 : index
    %c0_4 = arith.constant 0 : index
    %3 = vector.load %arg6[%c0_3, %c0_4] : memref<8x2048xf32, #tpu.memory_space<vmem>>, vector<8x2048xf32>
    tpu.vector_store %arg6[%c0_3, %c0_4], %2 {strides = array<i32>} : memref<8x2048xf32, #tpu.memory_space<vmem>>, vector<8x2048xf32>,
    %c0_i32 = arith.constant 0 : i32
    %c2_i32 = arith.constant 2 : i32
    %4 = arith.addi %c0_i32, %c2_i32 : i32
    %c1_i32 = arith.constant 1 : i32
    scf.for %arg8 = %c0_i32 to %4 step %c1_i32  : i32 {
      %c1024_i32 = arith.constant 1024 : i32
      %15 = arith.muli %arg8, %c1024_i32 : i32
      %16 = tpu.assume_multiple %15, 256 : i32
      %c0_16 = arith.constant 0 : index
      %17 = arith.index_cast %16 : i32 to index
      %18 = vector.load %arg6[%c0_16, %17] : memref<8x2048xf32, #tpu.memory_space<vmem>>, vector<8x256xf32>
      %c256_i32 = arith.constant 256 : i32
      %19 = arith.addi %15, %c256_i32 : i32
      %20 = tpu.assume_multiple %19, 256 : i32
      %c0_17 = arith.constant 0 : index
      %21 = arith.index_cast %20 : i32 to index
      %22 = vector.load %arg6[%c0_17, %21] : memref<8x2048xf32, #tpu.memory_space<vmem>>, vector<8x256xf32>
      %c512_i32 = arith.constant 512 : i32
      %23 = arith.addi %15, %c512_i32 : i32
      %24 = tpu.assume_multiple %23, 256 : i32
      %c0_18 = arith.constant 0 : index
      %25 = arith.index_cast %24 : i32 to index
      %26 = vector.load %arg6[%c0_18, %25] : memref<8x2048xf32, #tpu.memory_space<vmem>>, vector<8x256xf32>
      %c768_i32 = arith.constant 768 : i32
      %27 = arith.addi %15, %c768_i32 : i32
      %28 = tpu.assume_multiple %27, 256 : i32
      %c0_19 = arith.constant 0 : index
      %29 = arith.index_cast %28 : i32 to index
      %30 = vector.load %arg6[%c0_19, %29] : memref<8x2048xf32, #tpu.memory_space<vmem>>, vector<8x256xf32>
      %31 = arith.maximumf %18, %22 : vector<8x256xf32>
      %32 = arith.maximumf %26, %30 : vector<8x256xf32>
      %33 = arith.maximumf %31, %32 : vector<8x256xf32>
      %cst_20 = arith.constant 0.000000e+00 : f32
      %34 = vector.broadcast %cst_20 : f32 to vector<8x256xf32>
      %35 = arith.maximumf %33, %34 : vector<8x256xf32>
      %c8_i32 = arith.constant 8 : i32
      %36 = arith.muli %arg8, %c8_i32 : i32
      %37 = tpu.assume_multiple %36, 8 : i32
      %38 = arith.index_cast %37 : i32 to index
      %c0_21 = arith.constant 0 : index
      %39 = vector.load %arg7[%38, %c0_21] : memref<16x256xf32, #tpu.memory_space<vmem>>, vector<8x256xf32>
      tpu.vector_store %arg7[%38, %c0_21], %35 {strides = array<i32>} : memref<16x256xf32, #tpu.memory_space<vmem>>, vector<8x256xf32>,
    }
    %c2_i32_5 = arith.constant 2 : i32
    %c0_6 = arith.constant 0 : index
    %c0_7 = arith.constant 0 : index
    %5 = vector.load %arg7[%c0_6, %c0_7] : memref<16x256xf32, #tpu.memory_space<vmem>>, vector<16x256xf32>
    %6 = arith.truncf %5 : vector<16x256xf32> to vector<16x256xbf16>
    %c0_8 = arith.constant 0 : index
    %c0_9 = arith.constant 0 : index
    %7 = vector.load %arg3[%c0_8, %c0_9] : memref<256x256xbf16, #tpu.memory_space<vmem>>, vector<256x256xbf16>
    %cst_10 = arith.constant dense<0.000000e+00> : vector<16x256xf32>
    %8 = tpu.matmul %6, %7, %cst_10 {dimension_numbers = #tpu.dot_dimension_numbers<[1], [0], [0], [1], [0, 0, 1, 1], [], []>} : vector<16x256xbf16>, vector<256x256xbf16>, vector<16x256xf32> -> vector<16x256xf32>
    %c0_11 = arith.constant 0 : index
    %c0_12 = arith.constant 0 : index
    %9 = vector.load %arg4[%c0_11, %c0_12] : memref<1x256xf32, #tpu.memory_space<vmem>>, vector<1x256xf32>
    %10 = vector.broadcast %9 : vector<1x256xf32> to vector<16x256xf32>
    %11 = arith.addf %8, %10 : vector<16x256xf32>
    %12 = vector.shape_cast %11 : vector<16x256xf32> to vector<2x8x256xf32>
    %13 = vector.extract_strided_slice %12 {offsets = [0, 0, 0], sizes = [2, 6, 256], strides = [1, 1, 1]} : vector<2x8x256xf32> to vector<2x6x256xf32>
    %c0_13 = arith.constant 0 : index
    %c0_14 = arith.constant 0 : index
    %c0_15 = arith.constant 0 : index
    %14 = vector.load %arg5[%c0_13, %c0_14, %c0_15] : memref<2x6x256xf32, #tpu.memory_space<vmem>>, vector<2x6x256xf32>
    tpu.vector_store %arg5[%c0_13, %c0_14, %c0_15], %13 {strides = array<i32>} : memref<2x6x256xf32, #tpu.memory_space<vmem>>, vector<2x6x256xf32>,
    return
  }
  func.func @transform_0(%arg0: i32) -> (i32, i32) {
    %c0_i32 = arith.constant 0 : i32
    %c0_i32_0 = arith.constant 0 : i32
    return %c0_i32, %arg0 : i32, i32
  }
  func.func @transform_1(%arg0: i32) -> (i32, i32) {
    %c0_i32 = arith.constant 0 : i32
    %c0_i32_0 = arith.constant 0 : i32
    %c0_i32_1 = arith.constant 0 : i32
    return %c0_i32, %c0_i32_0 : i32, i32
  }
  func.func @transform_2(%arg0: i32) -> (i32, i32) {
    %c0_i32 = arith.constant 0 : i32
    %c0_i32_0 = arith.constant 0 : i32
    %c0_i32_1 = arith.constant 0 : i32
    return %c0_i32, %c0_i32_0 : i32, i32
  }
  func.func @transform_3(%arg0: i32) -> (i32, i32) {
    %c0_i32 = arith.constant 0 : i32
    %c0_i32_0 = arith.constant 0 : i32
    %c0_i32_1 = arith.constant 0 : i32
    return %c0_i32, %c0_i32_0 : i32, i32
  }
  func.func @transform_4(%arg0: i32) -> (i32, i32, i32) {
    %c0_i32 = arith.constant 0 : i32
    %c0_i32_0 = arith.constant 0 : i32
    %c0_i32_1 = arith.constant 0 : i32
    return %arg0, %c0_i32, %c0_i32_0 : i32, i32, i32
  }
}

</mosaic_0001>

<llo_original>
// kernel: _lambda_.1
$region0: #{_lambda_.1}
  #allocation0 [shape = 'u32[]', space=smem, size = 0x4, offset = 0x4, fixed_abs, tag = 'smem constant byte address 0x4 - core index']
  #allocation1 [shape = 'u32[144,128]{1,0:T(1,128)}', space=vmem, size = 0x12000, scoped, tag = 'internal scratch']
  #allocation2 [shape = 'f32[8,2048]{1,0:T(8,128)}', space=vmem, size = 0x10000, scoped, tag = 'scratch operand']
  #allocation3 [shape = 'f32[16,256]{1,0:T(8,128)}', space=vmem, size = 0x4000, scoped, tag = 'scratch operand']
  %s0 = inlined_call_operand.vmem [shape: bf16[32,2048], index: 0, kind: input, shape index: {}]
  %s1 = inlined_call_operand.vmem [shape: bf16[8,32], index: 1, kind: input, shape index: {}]
  %s2 = inlined_call_operand.vmem [shape: bf16[256,256], index: 2, kind: input, shape index: {}]
  %s3 = inlined_call_operand.vmem [shape: f32[1,256], index: 3, kind: input, shape index: {}]
  %s4 = inlined_call_operand.vmem [shape: f32[2,6,256], index: 4, kind: output, shape index: {}]
  %s5 = sld [smem:[#allocation0]]
  $region33: #{_lambda_.1} parent=0
    _
  %s7 = ssub.s32 1, %s5
  %s8 = scalar_select 0, %s7, %s5
  // Predicated region
  $region2: #{_lambda_.1} parent=0 // pred_check
    _
  $region3: #{_lambda_.1} parent=0 // pred_check_branch
    %10 = sbr.rel (0) target = $region5
  $region4: #{_lambda_.1} parent=0 // pred_region
    _
  $region5: #{_lambda_.1} parent=0 // pred_fallthru
    _
  // Predicated region
  $region6: #{_lambda_.1} parent=0 // pred_check
    _
  $region7: #{_lambda_.1} parent=0 // pred_check_branch
    %12 = sbr.rel (0) target = $region9
  $region8: #{_lambda_.1} parent=0 // pred_region
    _
  $region9: #{_lambda_.1} parent=0 // pred_fallthru
    _
  // Predicated region
  $region10: #{_lambda_.1} parent=0 // pred_check
    _
  $region11: #{_lambda_.1} parent=0 // pred_check_branch
    %14 = sbr.rel (0) target = $region13
  $region12: #{_lambda_.1} parent=0 // pred_region
    _
  $region13: #{_lambda_.1} parent=0 // pred_fallthru
    _
  // Predicated region
  $region14: #{_lambda_.1} parent=0 // pred_check
    _
  $region15: #{_lambda_.1} parent=0 // pred_check_branch
    %16 = sbr.rel (0) target = $region17
  $region16: #{_lambda_.1} parent=0 // pred_region
    _
  $region17: #{_lambda_.1} parent=0 // pred_fallthru
    _
  %v18 = vld [vmem:[%s1] sm:$0xf]
  %v19 = vld [vmem:[%s0] sm:$0xff]
  %v20 = vld [vmem:[%s0 + $0x8] sm:$0xff]
  %v21 = vld [vmem:[%s0 + $0x10] sm:$0xff]
  %v22 = vld [vmem:[%s0 + $0x18] sm:$0xff]
  %v23 = vld [vmem:[%s0 + $0x20] sm:$0xff]
  %v24 = vld [vmem:[%s0 + $0x28] sm:$0xff]
  %v25 = vld [vmem:[%s0 + $0x30] sm:$0xff]
  %v26 = vld [vmem:[%s0 + $0x38] sm:$0xff]
  %v27 = vld [vmem:[%s0 + $0x40] sm:$0xff]
  %v28 = vld [vmem:[%s0 + $0x48] sm:$0xff]
  %v29 = vld [vmem:[%s0 + $0x50] sm:$0xff]
  %v30 = vld [vmem:[%s0 + $0x58] sm:$0xff]
  %v31 = vld [vmem:[%s0 + $0x60] sm:$0xff]
  %v32 = vld [vmem:[%s0 + $0x68] sm:$0xff]
  %v33 = vld [vmem:[%s0 + $0x70] sm:$0xff]
  %v34 = vld [vmem:[%s0 + $0x78] sm:$0xff]
  %v35 = vld [vmem:[%s0 + $0x80] sm:$0xff]
  %v36 = vld [vmem:[%s0 + $0x88] sm:$0xff]
  %v37 = vld [vmem:[%s0 + $0x90] sm:$0xff]
  %v38 = vld [vmem:[%s0 + $0x98] sm:$0xff]
  %v39 = vld [vmem:[%s0 + $0xa0] sm:$0xff]
  %v40 = vld [vmem:[%s0 + $0xa8] sm:$0xff]
  %v41 = vld [vmem:[%s0 + $0xb0] sm:$0xff]
  %v42 = vld [vmem:[%s0 + $0xb8] sm:$0xff]
  %v43 = vld [vmem:[%s0 + $0xc0] sm:$0xff]
  %v44 = vld [vmem:[%s0 + $0xc8] sm:$0xff]
  %v45 = vld [vmem:[%s0 + $0xd0] sm:$0xff]
  %v46 = vld [vmem:[%s0 + $0xd8] sm:$0xff]
  %v47 = vld [vmem:[%s0 + $0xe0] sm:$0xff]
  %v48 = vld [vmem:[%s0 + $0xe8] sm:$0xff]
  %v49 = vld [vmem:[%s0 + $0xf0] sm:$0xff]
  %v50 = vld [vmem:[%s0 + $0xf8] sm:$0xff]
  %v83 = vunpack.c.l.b16 %v19
  %v84 = vunpack.c.h.b16 %v19
  %v85 = vunpack.c.l.b16 %v20
  %v86 = vunpack.c.h.b16 %v20
  %v87 = vunpack.c.l.b16 %v21
  %v88 = vunpack.c.h.b16 %v21
  %v89 = vunpack.c.l.b16 %v22
  %v90 = vunpack.c.h.b16 %v22
  %v91 = vunpack.c.l.b16 %v23
  %v92 = vunpack.c.h.b16 %v23
  %v93 = vunpack.c.l.b16 %v24
  %v94 = vunpack.c.h.b16 %v24
  %v95 = vunpack.c.l.b16 %v25
  %v96 = vunpack.c.h.b16 %v25
  %v97 = vunpack.c.l.b16 %v26
  %v98 = vunpack.c.h.b16 %v26
  %v99 = vunpack.c.l.b16 %v27
  %v100 = vunpack.c.h.b16 %v27
  %v101 = vunpack.c.l.b16 %v28
  %v102 = vunpack.c.h.b16 %v28
  %v103 = vunpack.c.l.b16 %v29
  %v104 = vunpack.c.h.b16 %v29
  %v105 = vunpack.c.l.b16 %v30
  %v106 = vunpack.c.h.b16 %v30
  %v107 = vunpack.c.l.b16 %v31
  %v108 = vunpack.c.h.b16 %v31
  %v109 = vunpack.c.l.b16 %v32
  %v110 = vunpack.c.h.b16 %v32
  %v111 = vunpack.c.l.b16 %v33
  %v112 = vunpack.c.h.b16 %v33
  %v113 = vunpack.c.l.b16 %v34
  %v114 = vunpack.c.h.b16 %v34
  %v115 = vunpack.c.l.b16 %v35
  %v116 = vunpack.c.h.b16 %v35
  %v117 = vunpack.c.l.b16 %v36
  %v118 = vunpack.c.h.b16 %v36
  %v119 = vunpack.c.l.b16 %v37
  %v120 = vunpack.c.h.b16 %v37
  %v121 = vunpack.c.l.b16 %v38
  %v122 = vunpack.c.h.b16 %v38
  %v123 = vunpack.c.l.b16 %v39
  %v124 = vunpack.c.h.b16 %v39
  %v125 = vunpack.c.l.b16 %v40
  %v126 = vunpack.c.h.b16 %v40
  %v127 = vunpack.c.l.b16 %v41
  %v128 = vunpack.c.h.b16 %v41
  %v129 = vunpack.c.l.b16 %v42
  %v130 = vunpack.c.h.b16 %v42
  %v131 = vunpack.c.l.b16 %v43
  %v132 = vunpack.c.h.b16 %v43
  %v133 = vunpack.c.l.b16 %v44
  %v134 = vunpack.c.h.b16 %v44
  %v135 = vunpack.c.l.b16 %v45
  %v136 = vunpack.c.h.b16 %v45
  %v137 = vunpack.c.l.b16 %v46
  %v138 = vunpack.c.h.b16 %v46
  %v139 = vunpack.c.l.b16 %v47
  %v140 = vunpack.c.h.b16 %v47
  %v141 = vunpack.c.l.b16 %v48
  %v142 = vunpack.c.h.b16 %v48
  %v143 = vunpack.c.l.b16 %v49
  %v144 = vunpack.c.h.b16 %v49
  %v145 = vunpack.c.l.b16 %v50
  %v146 = vunpack.c.h.b16 %v50
  %v147 = vpack.c.b16 %v99, %v83
  %v148 = vpack.c.b16 %v100, %v84
  %v149 = vpack.c.b16 %v101, %v85
  %v150 = vpack.c.b16 %v102, %v86
  %v151 = vpack.c.b16 %v103, %v87
  %v152 = vpack.c.b16 %v104, %v88
  %v153 = vpack.c.b16 %v105, %v89
  %v154 = vpack.c.b16 %v106, %v90
  %v155 = vpack.c.b16 %v107, %v91
  %v156 = vpack.c.b16 %v108, %v92
  %v157 = vpack.c.b16 %v109, %v93
  %v158 = vpack.c.b16 %v110, %v94
  %v159 = vpack.c.b16 %v111, %v95
  %v160 = vpack.c.b16 %v112, %v96
  %v161 = vpack.c.b16 %v113, %v97
  %v162 = vpack.c.b16 %v114, %v98
  %v163 = vpack.c.b16 %v131, %v115
  %v164 = vpack.c.b16 %v132, %v116
  %v165 = vpack.c.b16 %v133, %v117
  %v166 = vpack.c.b16 %v134, %v118
  %v167 = vpack.c.b16 %v135, %v119
  %v168 = vpack.c.b16 %v136, %v120
  %v169 = vpack.c.b16 %v137, %v121
  %v170 = vpack.c.b16 %v138, %v122
  %v171 = vpack.c.b16 %v139, %v123
  %v172 = vpack.c.b16 %v140, %v124
  %v173 = vpack.c.b16 %v141, %v125
  %v174 = vpack.c.b16 %v142, %v126
  %v175 = vpack.c.b16 %v143, %v127
  %v176 = vpack.c.b16 %v144, %v128
  %v177 = vpack.c.b16 %v145, %v129
  %v178 = vpack.c.b16 %v146, %v130
  %vm211 = vcmask 261120
  %v213 = vsel %vm211, %v18, 0
  %215 = vmatprep.subr.bf16.mxu0 %v148
  %216 = vmatpush1.bf16.msra.mxu0 %v147
  %217 = vmatprep.subr.bf16.mxu0 %v164
  %218 = vmatpush1.bf16.msra.mxu0 %v163
  %219 = vmatprep.subr.bf16.mxu0 0
  %220 = vmatpush1.bf16.msra.mxu0 0
  %221 = vmatprep.subr.bf16.mxu0 0
  %222 = vmatpush1.bf16.msra.mxu0 0
  %223 = vmatprep.subr.bf16.mxu0 0
  %224 = vmatpush1.bf16.msra.mxu0 0
  %225 = vmatprep.subr.bf16.mxu0 0
  %226 = vmatpush1.bf16.msra.mxu0 0
  %227 = vmatprep.subr.bf16.mxu0 0
  %228 = vmatpush1.bf16.msra.mxu0 0
  %229 = vmatprep.subr.bf16.mxu0 0
  %230 = vmatpush1.bf16.msra.mxu0 0
  %231 = vmatprep.subr.bf16.mxu0 0
  %232 = vmatpush1.bf16.msra.mxu0 0
  %233 = vmatprep.subr.bf16.mxu0 0
  %234 = vmatpush1.bf16.msra.mxu0 0
  %235 = vmatprep.subr.bf16.mxu0 0
  %236 = vmatpush1.bf16.msra.mxu0 0
  %237 = vmatprep.subr.bf16.mxu0 0
  %238 = vmatpush1.bf16.msra.mxu0 0
  %239 = vmatprep.subr.bf16.mxu0 0
  %240 = vmatpush1.bf16.msra.mxu0 0
  %241 = vmatprep.subr.bf16.mxu0 0
  %242 = vmatpush1.bf16.msra.mxu0 0
  %243 = vmatprep.subr.bf16.mxu0 0
  %244 = vmatpush1.bf16.msra.mxu0 0
  %245 = vmatprep.subr.bf16.mxu0 0
  %246 = vmatpush1.bf16.msra.mxu0 0
  %247 = vmatprep.mubr.bf16.mxu0 0
  %248 = vmatmul.mubr.bf16.gmra.mrb[0].mxu0 %v213
  %v249 = vpop.f32.mrb[0].mxu0
  %v250 = vadd.f32 0.0, %v249
  %v251 = vpop.f32.mrb[0].mxu0
  %v252 = vadd.f32 0.0, %v251
  %v253 = vpop.f32.mrb[0].mxu0
  %v254 = vpop.f32.mrb[0].mxu0
  %255 = vdwg.mxu0
  %256 = vmatprep.subr.bf16.mxu0 %v150
  %257 = vmatpush1.bf16.msra.mxu0 %v149
  %258 = vmatprep.subr.bf16.mxu0 %v166
  %259 = vmatpush1.bf16.msra.mxu0 %v165
  %260 = vmatprep.subr.bf16.mxu0 0
  %261 = vmatpush1.bf16.msra.mxu0 0
  %262 = vmatprep.subr.bf16.mxu0 0
  %263 = vmatpush1.bf16.msra.mxu0 0
  %264 = vmatprep.subr.bf16.mxu0 0
  %265 = vmatpush1.bf16.msra.mxu0 0
  %266 = vmatprep.subr.bf16.mxu0 0
  %267 = vmatpush1.bf16.msra.mxu0 0
  %268 = vmatprep.subr.bf16.mxu0 0
  %269 = vmatpush1.bf16.msra.mxu0 0
  %270 = vmatprep.subr.bf16.mxu0 0
  %271 = vmatpush1.bf16.msra.mxu0 0
  %272 = vmatprep.subr.bf16.mxu0 0
  %273 = vmatpush1.bf16.msra.mxu0 0
  %274 = vmatprep.subr.bf16.mxu0 0
  %275 = vmatpush1.bf16.msra.mxu0 0
  %276 = vmatprep.subr.bf16.mxu0 0
  %277 = vmatpush1.bf16.msra.mxu0 0
  %278 = vmatprep.subr.bf16.mxu0 0
  %279 = vmatpush1.bf16.msra.mxu0 0
  %280 = vmatprep.subr.bf16.mxu0 0
  %281 = vmatpush1.bf16.msra.mxu0 0
  %282 = vmatprep.subr.bf16.mxu0 0
  %283 = vmatpush1.bf16.msra.mxu0 0
  %284 = vmatprep.subr.bf16.mxu0 0
  %285 = vmatpush1.bf16.msra.mxu0 0
  %286 = vmatprep.subr.bf16.mxu0 0
  %287 = vmatpush1.bf16.msra.mxu0 0
  %288 = vmatprep.mubr.bf16.mxu0 0
  %289 = vmatmul.mubr.bf16.gmra.mrb[0].mxu0 %v213
  %v290 = vpop.f32.mrb[0].mxu0
  %v291 = vadd.f32 0.0, %v290
  %v292 = vpop.f32.mrb[0].mxu0
  %v293 = vadd.f32 0.0, %v292
  %v294 = vpop.f32.mrb[0].mxu0
  %v295 = vpop.f32.mrb[0].mxu0
  %296 = vdwg.mxu0
  %297 = vmatprep.subr.bf16.mxu0 %v152
  %298 = vmatpush1.bf16.msra.mxu0 %v151
  %299 = vmatprep.subr.bf16.mxu0 %v168
  %300 = vmatpush1.bf16.msra.mxu0 %v167
  %301 = vmatprep.subr.bf16.mxu0 0
  %302 = vmatpush1.bf16.msra.mxu0 0
  %303 = vmatprep.subr.bf16.mxu0 0
  %304 = vmatpush1.bf16.msra.mxu0 0
  %305 = vmatprep.subr.bf16.mxu0 0
  %306 = vmatpush1.bf16.msra.mxu0 0
  %307 = vmatprep.subr.bf16.mxu0 0
  %308 = vmatpush1.bf16.msra.mxu0 0
  %309 = vmatprep.subr.bf16.mxu0 0
  %310 = vmatpush1.bf16.msra.mxu0 0
  %311 = vmatprep.subr.bf16.mxu0 0
  %312 = vmatpush1.bf16.msra.mxu0 0
  %313 = vmatprep.subr.bf16.mxu0 0
  %314 = vmatpush1.bf16.msra.mxu0 0
  %315 = vmatprep.subr.bf16.mxu0 0
  %316 = vmatpush1.bf16.msra.mxu0 0
  %317 = vmatprep.subr.bf16.mxu0 0
  %318 = vmatpush1.bf16.msra.mxu0 0
  %319 = vmatprep.subr.bf16.mxu0 0
  %320 = vmatpush1.bf16.msra.mxu0 0
  %321 = vmatprep.subr.bf16.mxu0 0
  %322 = vmatpush1.bf16.msra.mxu0 0
  %323 = vmatprep.subr.bf16.mxu0 0
  %324 = vmatpush1.bf16.msra.mxu0 0
  %325 = vmatprep.subr.bf16.mxu0 0
  %326 = vmatpush1.bf16.msra.mxu0 0
  %327 = vmatprep.subr.bf16.mxu0 0
  %328 = vmatpush1.bf16.msra.mxu0 0
  %329 = vmatprep.mubr.bf16.mxu0 0
  %330 = vmatmul.mubr.bf16.gmra.mrb[0].mxu0 %v213
  %v331 = vpop.f32.mrb[0].mxu0
  %v332 = vadd.f32 0.0, %v331
  %v333 = vpop.f32.mrb[0].mxu0
  %v334 = vadd.f32 0.0, %v333
  %v335 = vpop.f32.mrb[0].mxu0
  %v336 = vpop.f32.mrb[0].mxu0
  %337 = vdwg.mxu0
  %338 = vmatprep.subr.bf16.mxu0 %v154
  %339 = vmatpush1.bf16.msra.mxu0 %v153
  %340 = vmatprep.subr.bf16.mxu0 %v170
  %341 = vmatpush1.bf16.msra.mxu0 %v169
  %342 = vmatprep.subr.bf16.mxu0 0
  %343 = vmatpush1.bf16.msra.mxu0 0
  %344 = vmatprep.subr.bf16.mxu0 0
  %345 = vmatpush1.bf16.msra.mxu0 0
  %346 = vmatprep.subr.bf16.mxu0 0
  %347 = vmatpush1.bf16.msra.mxu0 0
  %348 = vmatprep.subr.bf16.mxu0 0
  %349 = vmatpush1.bf16.msra.mxu0 0
  %350 = vmatprep.subr.bf16.mxu0 0
  %351 = vmatpush1.bf16.msra.mxu0 0
  %352 = vmatprep.subr.bf16.mxu0 0
  %353 = vmatpush1.bf16.msra.mxu0 0
  %354 = vmatprep.subr.bf16.mxu0 0
  %355 = vmatpush1.bf16.msra.mxu0 0
  %356 = vmatprep.subr.bf16.mxu0 0
  %357 = vmatpush1.bf16.msra.mxu0 0
  %358 = vmatprep.subr.bf16.mxu0 0
  %359 = vmatpush1.bf16.msra.mxu0 0
  %360 = vmatprep.subr.bf16.mxu0 0
  %361 = vmatpush1.bf16.msra.mxu0 0
  %362 = vmatprep.subr.bf16.mxu0 0
  %363 = vmatpush1.bf16.msra.mxu0 0
  %364 = vmatprep.subr.bf16.mxu0 0
  %365 = vmatpush1.bf16.msra.mxu0 0
  %366 = vmatprep.subr.bf16.mxu0 0
  %367 = vmatpush1.bf16.msra.mxu0 0
  %368 = vmatprep.subr.bf16.mxu0 0
  %369 = vmatpush1.bf16.msra.mxu0 0
  %370 = vmatprep.mubr.bf16.mxu0 0
  %371 = vmatmul.mubr.bf16.gmra.mrb[0].mxu0 %v213
  %v372 = vpop.f32.mrb[0].mxu0
  %v373 = vadd.f32 0.0, %v372
  %v374 = vpop.f32.mrb[0].mxu0
  %v375 = vadd.f32 0.0, %v374
  %v376 = vpop.f32.mrb[0].mxu0
  %v377 = vpop.f32.mrb[0].mxu0
  %378 = vdwg.mxu0
  %379 = vmatprep.subr.bf16.mxu0 %v156
  %380 = vmatpush1.bf16.msra.mxu0 %v155
  %381 = vmatprep.subr.bf16.mxu0 %v172
  %382 = vmatpush1.bf16.msra.mxu0 %v171
  %383 = vmatprep.subr.bf16.mxu0 0
  %384 = vmatpush1.bf16.msra.mxu0 0
  %385 = vmatprep.subr.bf16.mxu0 0
  %386 = vmatpush1.bf16.msra.mxu0 0
  %387 = vmatprep.subr.bf16.mxu0 0
  %388 = vmatpush1.bf16.msra.mxu0 0
  %389 = vmatprep.subr.bf16.mxu0 0
  %390 = vmatpush1.bf16.msra.mxu0 0
  %391 = vmatprep.subr.bf16.mxu0 0
  %392 = vmatpush1.bf16.msra.mxu0 0
  %393 = vmatprep.subr.bf16.mxu0 0
  %394 = vmatpush1.bf16.msra.mxu0 0
  %395 = vmatprep.subr.bf16.mxu0 0
  %396 = vmatpush1.bf16.msra.mxu0 0
  %397 = vmatprep.subr.bf16.mxu0 0
  %398 = vmatpush1.bf16.msra.mxu0 0
  %399 = vmatprep.subr.bf16.mxu0 0
  %400 = vmatpush1.bf16.msra.mxu0 0
  %401 = vmatprep.subr.bf16.mxu0 0
  %402 = vmatpush1.bf16.msra.mxu0 0
  %403 = vmatprep.subr.bf16.mxu0 0
  %404 = vmatpush1.bf16.msra.mxu0 0
  %405 = vmatprep.subr.bf16.mxu0 0
  %406 = vmatpush1.bf16.msra.mxu0 0
  %407 = vmatprep.subr.bf16.mxu0 0
  %408 = vmatpush1.bf16.msra.mxu0 0
  %409 = vmatprep.subr.bf16.mxu0 0
  %410 = vmatpush1.bf16.msra.mxu0 0
  %411 = vmatprep.mubr.bf16.mxu0 0
  %412 = vmatmul.mubr.bf16.gmra.mrb[0].mxu0 %v213
  %v413 = vpop.f32.mrb[0].mxu0
  %v414 = vadd.f32 0.0, %v413
  %v415 = vpop.f32.mrb[0].mxu0
  %v416 = vadd.f32 0.0, %v415
  %v417 = vpop.f32.mrb[0].mxu0
  %v418 = vpop.f32.mrb[0].mxu0
  %419 = vdwg.mxu0
  %420 = vmatprep.subr.bf16.mxu0 %v158
  %421 = vmatpush1.bf16.msra.mxu0 %v157
  %422 = vmatprep.subr.bf16.mxu0 %v174
  %423 = vmatpush1.bf16.msra.mxu0 %v173
  %424 = vmatprep.subr.bf16.mxu0 0
  %425 = vmatpush1.bf16.msra.mxu0 0
  %426 = vmatprep.subr.bf16.mxu0 0
  %427 = vmatpush1.bf16.msra.mxu0 0
  %428 = vmatprep.subr.bf16.mxu0 0
  %429 = vmatpush1.bf16.msra.mxu0 0
  %430 = vmatprep.subr.bf16.mxu0 0
  %431 = vmatpush1.bf16.msra.mxu0 0
  %432 = vmatprep.subr.bf16.mxu0 0
  %433 = vmatpush1.bf16.msra.mxu0 0
  %434 = vmatprep.subr.bf16.mxu0 0
  %435 = vmatpush1.bf16.msra.mxu0 0
  %436 = vmatprep.subr.bf16.mxu0 0
  %437 = vmatpush1.bf16.msra.mxu0 0
  %438 = vmatprep.subr.bf16.mxu0 0
  %439 = vmatpush1.bf16.msra.mxu0 0
  %440 = vmatprep.subr.bf16.mxu0 0
  %441 = vmatpush1.bf16.msra.mxu0 0
  %442 = vmatprep.subr.bf16.mxu0 0
  %443 = vmatpush1.bf16.msra.mxu0 0
  %444 = vmatprep.subr.bf16.mxu0 0
  %445 = vmatpush1.bf16.msra.mxu0 0
  %446 = vmatprep.subr.bf16.mxu0 0
  %447 = vmatpush1.bf16.msra.mxu0 0
  %448 = vmatprep.subr.bf16.mxu0 0
  %449 = vmatpush1.bf16.msra.mxu0 0
  %450 = vmatprep.subr.bf16.mxu0 0
  %451 = vmatpush1.bf16.msra.mxu0 0
  %452 = vmatprep.mubr.bf16.mxu0 0
  %453 = vmatmul.mubr.bf16.gmra.mrb[0].mxu0 %v213
  %v454 = vpop.f32.mrb[0].mxu0
  %v455 = vadd.f32 0.0, %v454
  %v456 = vpop.f32.mrb[0].mxu0
  %v457 = vadd.f32 0.0, %v456
  %v458 = vpop.f32.mrb[0].mxu0
  %v459 = vpop.f32.mrb[0].mxu0
  %460 = vdwg.mxu0
  %461 = vmatprep.subr.bf16.mxu0 %v160
  %462 = vmatpush1.bf16.msra.mxu0 %v159
  %463 = vmatprep.subr.bf16.mxu0 %v176
  %464 = vmatpush1.bf16.msra.mxu0 %v175
  %465 = vmatprep.subr.bf16.mxu0 0
  %466 = vmatpush1.bf16.msra.mxu0 0
  %467 = vmatprep.subr.bf16.mxu0 0
  %468 = vmatpush1.bf16.msra.mxu0 0
  %469 = vmatprep.subr.bf16.mxu0 0
  %470 = vmatpush1.bf16.msra.mxu0 0
  %471 = vmatprep.subr.bf16.mxu0 0
  %472 = vmatpush1.bf16.msra.mxu0 0
  %473 = vmatprep.subr.bf16.mxu0 0
  %474 = vmatpush1.bf16.msra.mxu0 0
  %475 = vmatprep.subr.bf16.mxu0 0
  %476 = vmatpush1.bf16.msra.mxu0 0
  %477 = vmatprep.subr.bf16.mxu0 0
  %478 = vmatpush1.bf16.msra.mxu0 0
  %479 = vmatprep.subr.bf16.mxu0 0
  %480 = vmatpush1.bf16.msra.mxu0 0
  %481 = vmatprep.subr.bf16.mxu0 0
  %482 = vmatpush1.bf16.msra.mxu0 0
  %483 = vmatprep.subr.bf16.mxu0 0
  %484 = vmatpush1.bf16.msra.mxu0 0
  %485 = vmatprep.subr.bf16.mxu0 0
  %486 = vmatpush1.bf16.msra.mxu0 0
  %487 = vmatprep.subr.bf16.mxu0 0
  %488 = vmatpush1.bf16.msra.mxu0 0
  %489 = vmatprep.subr.bf16.mxu0 0
  %490 = vmatpush1.bf16.msra.mxu0 0
  %491 = vmatprep.subr.bf16.mxu0 0
  %492 = vmatpush1.bf16.msra.mxu0 0
  %493 = vmatprep.mubr.bf16.mxu0 0
  %494 = vmatmul.mubr.bf16.gmra.mrb[0].mxu0 %v213
  %v495 = vpop.f32.mrb[0].mxu0
  %v496 = vadd.f32 0.0, %v495
  %v497 = vpop.f32.mrb[0].mxu0
  %v498 = vadd.f32 0.0, %v497
  %v499 = vpop.f32.mrb[0].mxu0
  %v500 = vpop.f32.mrb[0].mxu0
  %501 = vdwg.mxu0
  %502 = vmatprep.subr.bf16.mxu0 %v162
  %503 = vmatpush1.bf16.msra.mxu0 %v161
  %504 = vmatprep.subr.bf16.mxu0 %v178
  %505 = vmatpush1.bf16.msra.mxu0 %v177
  %506 = vmatprep.subr.bf16.mxu0 0
  %507 = vmatpush1.bf16.msra.mxu0 0
  %508 = vmatprep.subr.bf16.mxu0 0
  %509 = vmatpush1.bf16.msra.mxu0 0
  %510 = vmatprep.subr.bf16.mxu0 0
  %511 = vmatpush1.bf16.msra.mxu0 0
  %512 = vmatprep.subr.bf16.mxu0 0
  %513 = vmatpush1.bf16.msra.mxu0 0
  %514 = vmatprep.subr.bf16.mxu0 0
  %515 = vmatpush1.bf16.msra.mxu0 0
  %516 = vmatprep.subr.bf16.mxu0 0
  %517 = vmatpush1.bf16.msra.mxu0 0
  %518 = vmatprep.subr.bf16.mxu0 0
  %519 = vmatpush1.bf16.msra.mxu0 0
  %520 = vmatprep.subr.bf16.mxu0 0
  %521 = vmatpush1.bf16.msra.mxu0 0
  %522 = vmatprep.subr.bf16.mxu0 0
  %523 = vmatpush1.bf16.msra.mxu0 0
  %524 = vmatprep.subr.bf16.mxu0 0
  %525 = vmatpush1.bf16.msra.mxu0 0
  %526 = vmatprep.subr.bf16.mxu0 0
  %527 = vmatpush1.bf16.msra.mxu0 0
  %528 = vmatprep.subr.bf16.mxu0 0
  %529 = vmatpush1.bf16.msra.mxu0 0
  %530 = vmatprep.subr.bf16.mxu0 0
  %531 = vmatpush1.bf16.msra.mxu0 0
  %532 = vmatprep.subr.bf16.mxu0 0
  %533 = vmatpush1.bf16.msra.mxu0 0
  %534 = vmatprep.mubr.bf16.mxu0 0
  %535 = vmatmul.mubr.bf16.gmra.mrb[0].mxu0 %v213
  %v536 = vpop.f32.mrb[0].mxu0
  %v537 = vadd.f32 0.0, %v536
  %v538 = vpop.f32.mrb[0].mxu0
  %v539 = vadd.f32 0.0, %v538
  %v540 = vpop.f32.mrb[0].mxu0
  %v541 = vpop.f32.mrb[0].mxu0
  %542 = vdwg.mxu0
  %543 = vst [vmem:[#allocation2] sm:$0xff] %v250
  %544 = vst [vmem:[#allocation2 + $0x8] sm:$0xff] %v252
  %545 = vst [vmem:[#allocation2 + $0x10] sm:$0xff] %v291
  %546 = vst [vmem:[#allocation2 + $0x18] sm:$0xff] %v293
  %547 = vst [vmem:[#allocation2 + $0x20] sm:$0xff] %v332
  %548 = vst [vmem:[#allocation2 + $0x28] sm:$0xff] %v334
  %549 = vst [vmem:[#allocation2 + $0x30] sm:$0xff] %v373
  %550 = vst [vmem:[#allocation2 + $0x38] sm:$0xff] %v375
  %551 = vst [vmem:[#allocation2 + $0x40] sm:$0xff] %v414
  %552 = vst [vmem:[#allocation2 + $0x48] sm:$0xff] %v416
  %553 = vst [vmem:[#allocation2 + $0x50] sm:$0xff] %v455
  %554 = vst [vmem:[#allocation2 + $0x58] sm:$0xff] %v457
  %555 = vst [vmem:[#allocation2 + $0x60] sm:$0xff] %v496
  %556 = vst [vmem:[#allocation2 + $0x68] sm:$0xff] %v498
  %557 = vst [vmem:[#allocation2 + $0x70] sm:$0xff] %v537
  %558 = vst [vmem:[#allocation2 + $0x78] sm:$0xff] %v539
  loop: start=0, step=1, limit=2
  $region18: #{_lambda_.1} parent=0 // loop_pre_header
    _
  $region19: #{_lambda_.1} parent=0 // loop_header
    %s560 = sphi 0, %s564
    %p561 = scmp.ge.s32.totalorder %s560, 2
  $region20: #{_lambda_.1} parent=0 // loop_header_branch
    %563 = sbr.rel (%p561) target = $region24
  $region21: #{_lambda_.1} parent=0 // loop_body
    %s565 = smul.u32 %s560, 1024
    %s566 = sshra.s32 %s565, 7
    %s567 = sand.u32 %s565, 127
    %s568 = smul.addr %s566, 8
    %s569 = scalar_lea.vmem [#allocation2], %s568
    %v570 = vld [vmem:[%s569] sm:$0xff]
    %v571 = vld [vmem:[%s569 + $0x8] sm:$0xff]
    %s572 = sadd.s32 %s565, 256
    %s573 = sshra.s32 %s572, 7
    %s574 = sand.u32 %s572, 127
    %s575 = smul.addr %s573, 8
    %s576 = scalar_lea.vmem [#allocation2], %s575
    %v577 = vld [vmem:[%s576] sm:$0xff]
    %v578 = vld [vmem:[%s576 + $0x8] sm:$0xff]
    %s579 = sadd.s32 %s565, 512
    %s580 = sshra.s32 %s579, 7
    %s581 = sand.u32 %s579, 127
    %s582 = smul.addr %s580, 8
    %s583 = scalar_lea.vmem [#allocation2], %s582
    %v584 = vld [vmem:[%s583] sm:$0xff]
    %v585 = vld [vmem:[%s583 + $0x8] sm:$0xff]
    %s586 = sadd.s32 %s565, 768
    %s587 = sshra.s32 %s586, 7
    %s588 = sand.u32 %s586, 127
    %s589 = smul.addr %s587, 8
    %s590 = scalar_lea.vmem [#allocation2], %s589
    %v591 = vld [vmem:[%s590] sm:$0xff]
    %v592 = vld [vmem:[%s590 + $0x8] sm:$0xff]
    %v593 = vmax.f32 %v570, %v577
    %v594 = vmax.f32 %v571, %v578
    %v595 = vmax.f32 %v584, %v591
    %v596 = vmax.f32 %v585, %v592
    %v597 = vmax.f32 %v593, %v595
    %v598 = vmax.f32 %v594, %v596
    %v599 = vmax.f32 %v597, 0.0
    %v600 = vmax.f32 %v598, 0.0
    %s601 = smul.u32 %s560, 8
    %s602 = sshra.s32 %s601, 3
    %s603 = sand.u32 %s601, 7
    %s604 = smul.u32 %s602, 2
    %s605 = smul.addr %s604, 8
    %s606 = scalar_lea.vmem [#allocation3], %s605
    %607 = vst [vmem:[%s606] sm:$0xff] %v599
    %608 = vst [vmem:[%s606 + $0x8] sm:$0xff] %v600
  $region22: #{_lambda_.1} parent=0 // loop_footer
    %s564 = sadd.s32 1, %s560
  $region23: #{_lambda_.1} parent=0 // loop_footer_branch
    %559 = sbr.rel target = $region19
  $region24: #{_lambda_.1} parent=0 // loop_exit
    _
  %v609 = vld [vmem:[#allocation3] sm:$0xff]
  %v610 = vld [vmem:[#allocation3 + $0x8] sm:$0xff]
  %v611 = vld [vmem:[#allocation3 + $0x10] sm:$0xff]
  %v612 = vld [vmem:[#allocation3 + $0x18] sm:$0xff]
  %v613 = vpack.c.bf16 %v611, %v609
  %v614 = vpack.c.bf16 %v612, %v610
  %v615 = vld [vmem:[%s2] sm:$0xff]
  %v616 = vld [vmem:[%s2 + $0x8] sm:$0xff]
  %v617 = vld [vmem:[%s2 + $0x10] sm:$0xff]
  %v618 = vld [vmem:[%s2 + $0x18] sm:$0xff]
  %v619 = vld [vmem:[%s2 + $0x20] sm:$0xff]
  %v620 = vld [vmem:[%s2 + $0x28] sm:$0xff]
  %v621 = vld [vmem:[%s2 + $0x30] sm:$0xff]
  %v622 = vld [vmem:[%s2 + $0x38] sm:$0xff]
  %v623 = vld [vmem:[%s2 + $0x40] sm:$0xff]
  %v624 = vld [vmem:[%s2 + $0x48] sm:$0xff]
  %v625 = vld [vmem:[%s2 + $0x50] sm:$0xff]
  %v626 = vld [vmem:[%s2 + $0x58] sm:$0xff]
  %v627 = vld [vmem:[%s2 + $0x60] sm:$0xff]
  %v628 = vld [vmem:[%s2 + $0x68] sm:$0xff]
  %v629 = vld [vmem:[%s2 + $0x70] sm:$0xff]
  %v630 = vld [vmem:[%s2 + $0x78] sm:$0xff]
  %v631 = vld [vmem:[%s2 + $0x80] sm:$0xff]
  %v632 = vld [vmem:[%s2 + $0x88] sm:$0xff]
  %v633 = vld [vmem:[%s2 + $0x90] sm:$0xff]
  %v634 = vld [vmem:[%s2 + $0x98] sm:$0xff]
  %v635 = vld [vmem:[%s2 + $0xa0] sm:$0xff]
  %v636 = vld [vmem:[%s2 + $0xa8] sm:$0xff]
  %v637 = vld [vmem:[%s2 + $0xb0] sm:$0xff]
  %v638 = vld [vmem:[%s2 + $0xb8] sm:$0xff]
  %v639 = vld [vmem:[%s2 + $0xc0] sm:$0xff]
  %v640 = vld [vmem:[%s2 + $0xc8] sm:$0xff]
  %v641 = vld [vmem:[%s2 + $0xd0] sm:$0xff]
  %v642 = vld [vmem:[%s2 + $0xd8] sm:$0xff]
  %v643 = vld [vmem:[%s2 + $0xe0] sm:$0xff]
  %v644 = vld [vmem:[%s2 + $0xe8] sm:$0xff]
  %v645 = vld [vmem:[%s2 + $0xf0] sm:$0xff]
  %v646 = vld [vmem:[%s2 + $0xf8] sm:$0xff]
  %v647 = vld [vmem:[%s3] sm:$0x3]
  %v649 = vlaneseq
  %v650 = vshrl.u32 %v649, 7
  %v651 = vsub.s32 0, %v650
  %v652 = vrot.slane %v647, %v651
  %v653 = vlaneseq
  %v654 = vshrl.u32 %v653, 7
  %v655 = vsub.s32 1, %v654
  %v656 = vrot.slane %v647, %v655
  %v691 = vunpack.c.l.b16 %v615
  %v692 = vunpack.c.h.b16 %v615
  %v693 = vunpack.c.l.b16 %v616
  %v694 = vunpack.c.h.b16 %v616
  %v695 = vunpack.c.l.b16 %v617
  %v696 = vunpack.c.h.b16 %v617
  %v697 = vunpack.c.l.b16 %v618
  %v698 = vunpack.c.h.b16 %v618
  %v699 = vunpack.c.l.b16 %v619
  %v700 = vunpack.c.h.b16 %v619
  %v701 = vunpack.c.l.b16 %v620
  %v702 = vunpack.c.h.b16 %v620
  %v703 = vunpack.c.l.b16 %v621
  %v704 = vunpack.c.h.b16 %v621
  %v705 = vunpack.c.l.b16 %v622
  %v706 = vunpack.c.h.b16 %v622
  %v707 = vunpack.c.l.b16 %v623
  %v708 = vunpack.c.h.b16 %v623
  %v709 = vunpack.c.l.b16 %v624
  %v710 = vunpack.c.h.b16 %v624
  %v711 = vunpack.c.l.b16 %v625
  %v712 = vunpack.c.h.b16 %v625
  %v713 = vunpack.c.l.b16 %v626
  %v714 = vunpack.c.h.b16 %v626
  %v715 = vunpack.c.l.b16 %v627
  %v716 = vunpack.c.h.b16 %v627
  %v717 = vunpack.c.l.b16 %v628
  %v718 = vunpack.c.h.b16 %v628
  %v719 = vunpack.c.l.b16 %v629
  %v720 = vunpack.c.h.b16 %v629
  %v721 = vunpack.c.l.b16 %v630
  %v722 = vunpack.c.h.b16 %v630
  %v723 = vunpack.c.l.b16 %v631
  %v724 = vunpack.c.h.b16 %v631
  %v725 = vunpack.c.l.b16 %v632
  %v726 = vunpack.c.h.b16 %v632
  %v727 = vunpack.c.l.b16 %v633
  %v728 = vunpack.c.h.b16 %v633
  %v729 = vunpack.c.l.b16 %v634
  %v730 = vunpack.c.h.b16 %v634
  %v731 = vunpack.c.l.b16 %v635
  %v732 = vunpack.c.h.b16 %v635
  %v733 = vunpack.c.l.b16 %v636
  %v734 = vunpack.c.h.b16 %v636
  %v735 = vunpack.c.l.b16 %v637
  %v736 = vunpack.c.h.b16 %v637
  %v737 = vunpack.c.l.b16 %v638
  %v738 = vunpack.c.h.b16 %v638
  %v739 = vunpack.c.l.b16 %v639
  %v740 = vunpack.c.h.b16 %v639
  %v741 = vunpack.c.l.b16 %v640
  %v742 = vunpack.c.h.b16 %v640
  %v743 = vunpack.c.l.b16 %v641
  %v744 = vunpack.c.h.b16 %v641
  %v745 = vunpack.c.l.b16 %v642
  %v746 = vunpack.c.h.b16 %v642
  %v747 = vunpack.c.l.b16 %v643
  %v748 = vunpack.c.h.b16 %v643
  %v749 = vunpack.c.l.b16 %v644
  %v750 = vunpack.c.h.b16 %v644
  %v751 = vunpack.c.l.b16 %v645
  %v752 = vunpack.c.h.b16 %v645
  %v753 = vunpack.c.l.b16 %v646
  %v754 = vunpack.c.h.b16 %v646
  %v755 = vpack.c.b16 %v693, %v691
  %v756 = vpack.c.b16 %v694, %v692
  %v757 = vpack.c.b16 %v697, %v695
  %v758 = vpack.c.b16 %v698, %v696
  %v759 = vpack.c.b16 %v701, %v699
  %v760 = vpack.c.b16 %v702, %v700
  %v761 = vpack.c.b16 %v705, %v703
  %v762 = vpack.c.b16 %v706, %v704
  %v763 = vpack.c.b16 %v709, %v707
  %v764 = vpack.c.b16 %v710, %v708
  %v765 = vpack.c.b16 %v713, %v711
  %v766 = vpack.c.b16 %v714, %v712
  %v767 = vpack.c.b16 %v717, %v715
  %v768 = vpack.c.b16 %v718, %v716
  %v769 = vpack.c.b16 %v721, %v719
  %v770 = vpack.c.b16 %v722, %v720
  %v771 = vpack.c.b16 %v725, %v723
  %v772 = vpack.c.b16 %v726, %v724
  %v773 = vpack.c.b16 %v729, %v727
  %v774 = vpack.c.b16 %v730, %v728
  %v775 = vpack.c.b16 %v733, %v731
  %v776 = vpack.c.b16 %v734, %v732
  %v777 = vpack.c.b16 %v737, %v735
  %v778 = vpack.c.b16 %v738, %v736
  %v779 = vpack.c.b16 %v741, %v739
  %v780 = vpack.c.b16 %v742, %v740
  %v781 = vpack.c.b16 %v745, %v743
  %v782 = vpack.c.b16 %v746, %v744
  %v783 = vpack.c.b16 %v749, %v747
  %v784 = vpack.c.b16 %v750, %v748
  %v785 = vpack.c.b16 %v753, %v751
  %v786 = vpack.c.b16 %v754, %v752
  %819 = vmatprep.subr.bf16.mxu0 %v756
  %820 = vmatpush1.bf16.msra.mxu0 %v755
  %821 = vmatprep.subr.bf16.mxu0 %v758
  %822 = vmatpush1.bf16.msra.mxu0 %v757
  %823 = vmatprep.subr.bf16.mxu0 %v760
  %824 = vmatpush1.bf16.msra.mxu0 %v759
  %825 = vmatprep.subr.bf16.mxu0 %v762
  %826 = vmatpush1.bf16.msra.mxu0 %v761
  %827 = vmatprep.subr.bf16.mxu0 %v764
  %828 = vmatpush1.bf16.msra.mxu0 %v763
  %829 = vmatprep.subr.bf16.mxu0 %v766
  %830 = vmatpush1.bf16.msra.mxu0 %v765
  %831 = vmatprep.subr.bf16.mxu0 %v768
  %832 = vmatpush1.bf16.msra.mxu0 %v767
  %833 = vmatprep.subr.bf16.mxu0 %v770
  %834 = vmatpush1.bf16.msra.mxu0 %v769
  %835 = vmatprep.subr.bf16.mxu0 %v772
  %836 = vmatpush1.bf16.msra.mxu0 %v771
  %837 = vmatprep.subr.bf16.mxu0 %v774
  %838 = vmatpush1.bf16.msra.mxu0 %v773
  %839 = vmatprep.subr.bf16.mxu0 %v776
  %840 = vmatpush1.bf16.msra.mxu0 %v775
  %841 = vmatprep.subr.bf16.mxu0 %v778
  %842 = vmatpush1.bf16.msra.mxu0 %v777
  %843 = vmatprep.subr.bf16.mxu0 %v780
  %844 = vmatpush1.bf16.msra.mxu0 %v779
  %845 = vmatprep.subr.bf16.mxu0 %v782
  %846 = vmatpush1.bf16.msra.mxu0 %v781
  %847 = vmatprep.subr.bf16.mxu0 %v784
  %848 = vmatpush1.bf16.msra.mxu0 %v783
  %849 = vmatprep.subr.bf16.mxu0 %v786
  %850 = vmatpush1.bf16.msra.mxu0 %v785
  %851 = vmatprep.mubr.bf16.mxu0 %v614
  %852 = vmatmul.mubr.bf16.gmra.mrb[0].mxu0 %v613
  %v853 = vpop.f32.mrb[0].mxu0
  %v854 = vadd.f32 %v652, %v853
  %v855 = vpop.f32.mrb[0].mxu0
  %v856 = vadd.f32 %v656, %v855
  %v857 = vpop.f32.mrb[0].mxu0
  %v858 = vadd.f32 %v652, %v857
  %v859 = vpop.f32.mrb[0].mxu0
  %v860 = vadd.f32 %v656, %v859
  %861 = vdwg.mxu0
  %862 = vst [vmem:[%s4] sm:$0x3f] %v854
  %863 = vst [vmem:[%s4 + $0x8] sm:$0x3f] %v856
  %864 = vst [vmem:[%s4 + $0x10] sm:$0x3f] %v858
  %865 = vst [vmem:[%s4 + $0x18] sm:$0x3f] %v860
  // Predicated region
  $region25: #{_lambda_.1} parent=0 // pred_check
    _
  $region26: #{_lambda_.1} parent=0 // pred_check_branch
    %867 = sbr.rel (0) target = $region28
  $region27: #{_lambda_.1} parent=0 // pred_region
    _
  $region28: #{_lambda_.1} parent=0 // pred_fallthru
    _
  // Predicated region
  $region29: #{_lambda_.1} parent=0 // pred_check
    _
  $region30: #{_lambda_.1} parent=0 // pred_check_branch
    %869 = sbr.rel (0) target = $region32
  $region31: #{_lambda_.1} parent=0 // pred_region
    _
  $region32: #{_lambda_.1} parent=0 // pred_fallthru
    _

</llo_original>
